<compile_context>
chip_gen: v7x
topology: tpu7x:2x2x1
jax: 0.10.0
libtpu: 0.0.40
codegen_flags: <defaults>
</compile_context>

<pallas_src>
import functools

import jax
import jax.numpy as jnp
from jax import lax
from jax.experimental import pallas as pl
from jax.experimental.pallas import tpu as pltpu

LEAKY_SLOPE = 0.05
BN_EPS = 1e-5
LANE = 128            # output-channel padding (lane-dense stores)
SUBLANE = 8           # contraction-dim channel padding
K_SIZE = 4            # every conv in D is 4x4
MXU_DTYPE = jnp.bfloat16
VMEM_BUDGET = 12 * 1024 * 1024   # keeps tiles inside the default scoped VMEM


def _round_up(x, m):
    return (x + m - 1) // m * m


def _vmem_bytes(tm, k, cp, out_bytes, compute_stats):
    a = tm * k * 2 * 2                       # bf16 A tile, double-buffered
    b = k * cp * 2 * 2                       # bf16 weight slab (conservative x2)
    o = tm * cp * out_bytes * 2              # output tile, double-buffered
    s = 2 * 2 * SUBLANE * cp * 4 if compute_stats else 0
    return a + b + o + s


def _pick_tm(m, k, cp, out_bytes, compute_stats):
    """Largest row-tile dividing M exactly that fits the VMEM budget."""
    caps = [c for c in (1024, 512, 256, 128, 64, 32, 16, 8) if m % c == 0]
    for cap in caps:
        if _vmem_bytes(cap, k, cp, out_bytes, compute_stats) <= VMEM_BUDGET:
            return cap
    if caps:
        return caps[-1]      # smallest tiling; wrapper raises vmem_limit_bytes
    return m                 # tiny / irregular M: single full-array block


# ------------------------------------------------------------------ fused conv-layer kernel
def _fused_conv_kernel(*refs, prologue, epilogue_act, compute_stats):
    """im2col matmul (bf16 operands, f32 accumulate) with optional fused pieces.

    prologue      : previous BN layer's per-channel affine + LeakyReLU applied to
                    the patch matrix (scale/shift already tiled to length K).
    epilogue_act  : LeakyReLU on the conv output (layers without BN).
    compute_stats : per-block (8, C) partial sum / sum-of-squares of the raw conv
                    output, reduced to BN batch statistics in XLA afterwards.
    """
    it = iter(refs)
    a_ref = next(it)
    b_ref = next(it)
    if prologue:
        scale_ref = next(it)
        shift_ref = next(it)
    y_ref = next(it)
    if compute_stats:
        s_ref = next(it)
        ss_ref = next(it)

    a = a_ref[...]
    if prologue:
        v = a.astype(jnp.float32) * scale_ref[...] + shift_ref[...]
        a = jnp.where(v >= 0, v, LEAKY_SLOPE * v)
    a = a.astype(MXU_DTYPE)

    y = jnp.dot(a, b_ref[...], preferred_element_type=jnp.float32)

    if compute_stats:
        tm, cp = y.shape
        s8 = jnp.zeros((SUBLANE, cp), jnp.float32)
        ss8 = jnp.zeros((SUBLANE, cp), jnp.float32)
        for g in range(tm // SUBLANE):          # static, VALU-only accumulation
            blk = y[g * SUBLANE:(g + 1) * SUBLANE, :]
            s8 = s8 + blk
            ss8 = ss8 + blk * blk
        s_ref[...] = s8
        ss_ref[...] = ss8

    if epilogue_act:
        y = jnp.where(y >= 0, y, LEAKY_SLOPE * y)
    y_ref[...] = y.astype(y_ref.dtype)


def fused_conv_layer(a, b, scale_k=None, shift_k=None, *,
                     epilogue_act, compute_stats, out_dtype=jnp.bfloat16):
    """A: (M, K) bf16 patch matrix, B: (K, Cp) bf16 lane-padded weight slab.

    Returns a tuple: (rows,) or (rows, sum_partials, sumsq_partials).
    """
    M, K = a.shape
    Kb, Cp = b.shape
    assert K == Kb and Cp % LANE == 0
    out_bytes = jnp.dtype(out_dtype).itemsize
    TM = _pick_tm(M, K, Cp, out_bytes, compute_stats)
    assert M % TM == 0
    if compute_stats:
        assert TM % SUBLANE == 0, "stats layers need row tiles that are multiples of 8"
    nblk = M // TM
    prologue = scale_k is not None

    in_specs = [pl.BlockSpec((TM, K), lambda i: (i, 0)),
                pl.BlockSpec((K, Cp), lambda i: (0, 0))]
    inputs = [a, b]
    if prologue:
        in_specs += [pl.BlockSpec((1, K), lambda i: (0, 0)),
                     pl.BlockSpec((1, K), lambda i: (0, 0))]
        inputs += [scale_k, shift_k]

    out_shape = [jax.ShapeDtypeStruct((M, Cp), out_dtype)]
    out_specs = [pl.BlockSpec((TM, Cp), lambda i: (i, 0))]
    if compute_stats:
        out_shape += [jax.ShapeDtypeStruct((nblk * SUBLANE, Cp), jnp.float32)] * 2
        out_specs += [pl.BlockSpec((SUBLANE, Cp), lambda i: (i, 0))] * 2

    est = _vmem_bytes(TM, K, Cp, out_bytes, compute_stats)
    cp_kwargs = dict(dimension_semantics=("parallel",))
    if est > VMEM_BUDGET:
        cp_kwargs["vmem_limit_bytes"] = min(int(est) + (4 << 20), 64 * 1024 * 1024)

    return pl.pallas_call(
        functools.partial(_fused_conv_kernel, prologue=prologue,
                          epilogue_act=epilogue_act, compute_stats=compute_stats),
        out_shape=tuple(out_shape),
        grid=(nblk,),
        in_specs=in_specs,
        out_specs=tuple(out_specs),
        compiler_params=pltpu.CompilerParams(**cp_kwargs),
    )(*inputs)


# ------------------------------------------------------------------ XLA-side glue (tiny)
def _im2col(x_nhwc, k, stride, pad):
    # TODO(synk): fold im2col into the conv kernel (per-tap accumulation with
    # strided reads) to avoid the k*k/stride^2 HBM expansion at large image sizes.
    N, H, W, C = x_nhwc.shape
    if pad:
        x_nhwc = jnp.pad(x_nhwc, ((0, 0), (pad, pad), (pad, pad), (0, 0)))
    Hp, Wp = H + 2 * pad, W + 2 * pad
    Ho = (Hp - k) // stride + 1
    Wo = (Wp - k) // stride + 1
    cols = []
    for di in range(k):
        for dj in range(k):
            cols.append(x_nhwc[:, di:di + (Ho - 1) * stride + 1:stride,
                                  dj:dj + (Wo - 1) * stride + 1:stride, :])
    patches = jnp.stack(cols, axis=3)                  # (N, Ho, Wo, k*k, C)
    return patches.reshape(N * Ho * Wo, k * k * C), (N, Ho, Wo)


def _weight_slab(w_oihw, c_in_padded, c_out_padded):
    """OIHW conv weight -> (k*k*Cin_pad8, Cout_pad128) bf16 slab, zero padded."""
    Cout, Cin, k, _ = w_oihw.shape
    w = jnp.transpose(w_oihw, (2, 3, 1, 0)).astype(jnp.float32)   # (k, k, Cin, Cout)
    slab = jnp.zeros((k, k, c_in_padded, c_out_padded), jnp.float32)
    slab = slab.at[:, :, :Cin, :Cout].set(w)
    return slab.reshape(k * k * c_in_padded, c_out_padded).astype(MXU_DTYPE)


def _pad_channel_vec(v, c_padded):
    return jnp.zeros((1, c_padded), jnp.float32).at[0, :v.shape[0]].set(v)


def _prep_rows(rows, cin_p, pending):
    """Slice rows to the 8-padded input width; apply a deferred BN affine + act."""
    r = rows[:, :cin_p]
    if pending is None:
        return r
    scale, shift = pending
    v = r.astype(jnp.float32) * scale[:, :cin_p] + shift[:, :cin_p]
    return jnp.where(v >= 0, v, LEAKY_SLOPE * v).astype(jnp.bfloat16)


# ------------------------------------------------------------------ discriminator forward
def d_forward(x_nchw, params, num_layer):
    x = jnp.transpose(x_nchw, (0, 2, 3, 1)).astype(jnp.bfloat16)  # single NCHW->NHWC
    cin = x.shape[-1]
    cin_p = _round_up(cin, SUBLANE)
    if cin_p != cin:
        x = jnp.pad(x, ((0, 0), (0, 0), (0, 0), (0, cin_p - cin)))

    # ---- layer 0: Conv(k4, s2, p1, no BN) + fused LeakyReLU -------------------
    a, (N, Ho, Wo) = _im2col(x, K_SIZE, 2, 1)
    cout = params["w0"].shape[0]
    cp_out = _round_up(cout, LANE)
    b = _weight_slab(params["w0"], cin_p, cp_out)
    (rows,) = fused_conv_layer(a, b, epilogue_act=True, compute_stats=False)
    pending = None      # deferred (scale, shift) of the most recent BN layer
    cur_c = cout

    # ---- hidden layers: Conv(k4, s2, p1) + BatchNorm(batch stats) + LeakyReLU -
    for i in range(1, num_layer):
        cin_p = _round_up(cur_c, SUBLANE)
        # consuming conv has pad=1 -> apply any deferred BN affine + act before
        # zero-padding; plain jnp so XLA fuses it with the im2col gather.
        rows_in = _prep_rows(rows, cin_p, pending)
        pending = None
        a, (N, Ho, Wo) = _im2col(rows_in.reshape(N, Ho, Wo, cin_p), K_SIZE, 2, 1)
        cout = params[f"w{i}"].shape[0]
        cp_out = _round_up(cout, LANE)
        b = _weight_slab(params[f"w{i}"], cin_p, cp_out)
        rows, s_p, ss_p = fused_conv_layer(a, b, epilogue_act=False, compute_stats=True)
        m = rows.shape[0]
        s = jnp.sum(s_p, axis=0, keepdims=True)           # reduce per-block partials
        ss = jnp.sum(ss_p, axis=0, keepdims=True)
        mean = s / m
        var = jnp.maximum(ss / m - mean * mean, 0.0)       # biased var (PyTorch BN)
        gamma = _pad_channel_vec(params[f"gamma{i}"], cp_out)   # padded lanes -> 0
        beta = _pad_channel_vec(params[f"beta{i}"], cp_out)
        scale = gamma * lax.rsqrt(var + BN_EPS)
        shift = beta - mean * scale
        pending = (scale, shift)        # applied inside the next kernel / jnp prep
        cur_c = cout

    # ---- final layer: Conv(k4, s1, p0), no BN, no activation ------------------
    cin_p = _round_up(cur_c, SUBLANE)
    cout = params["w_final"].shape[0]
    cp_out = _round_up(cout, LANE)
    b = _weight_slab(params["w_final"], cin_p, cp_out)
    a, (N, Ho, Wo) = _im2col(rows[:, :cin_p].reshape(N, Ho, Wo, cin_p), K_SIZE, 1, 0)
    if pending is not None:
        # pad=0 conv: fold the last BN affine + LeakyReLU into the matmul prologue
        scale_k = jnp.tile(pending[0][:, :cin_p], (1, K_SIZE * K_SIZE))
        shift_k = jnp.tile(pending[1][:, :cin_p], (1, K_SIZE * K_SIZE))
        (y,) = fused_conv_layer(a, b, scale_k, shift_k, epilogue_act=False,
                                compute_stats=False, out_dtype=jnp.float32)
    else:
        (y,) = fused_conv_layer(a, b, epilogue_act=False, compute_stats=False,
                                out_dtype=jnp.float32)
    return jnp.transpose(y[:, :cout].reshape(N, Ho, Wo, cout), (0, 3, 1, 2))


# ------------------------------------------------------------------ pure-JAX reference (f32)
def _conv_ref(x, w, stride, pad):
    return lax.conv_general_dilated(
        x, w, (stride, stride), [(pad, pad), (pad, pad)],
        dimension_numbers=("NCHW", "OIHW", "NCHW"),
        precision=lax.Precision.HIGHEST)


def d_forward_ref(x, params, num_layer):
    y = _conv_ref(x, params["w0"], 2, 1)
    y = jnp.where(y >= 0, y, LEAKY_SLOPE * y)
    for i in range(num_layer - 1):
        y = _conv_ref(y, params[f"w{i + 1}"], 2, 1)
        mean = jnp.mean(y, axis=(0, 2, 3), keepdims=True)
        var = jnp.var(y, axis=(0, 2, 3), keepdims=True)
        g = params[f"gamma{i + 1}"].reshape(1, -1, 1, 1)
        b = params[f"beta{i + 1}"].reshape(1, -1, 1, 1)
        y = (y - mean) / jnp.sqrt(var + BN_EPS) * g + b
        y = jnp.where(y >= 0, y, LEAKY_SLOPE * y)
    return _conv_ref(y, params["w_final"], 1, 0)


# ------------------------------------------------------------------ parameter init
def init_params(key, input_dim, conv_dim, num_layer):
    params = {}
    keys = iter(jax.random.split(key, 3 * num_layer + 4))
    params["w0"] = 0.1 * jax.random.normal(next(keys), (conv_dim, input_dim, 4, 4), jnp.float32)
    for i in range(num_layer - 1):
        cin, cout = conv_dim * 2 ** i, conv_dim * 2 ** (i + 1)
        params[f"w{i + 1}"] = 0.1 * jax.random.normal(next(keys), (cout, cin, 4, 4), jnp.float32)
        params[f"gamma{i + 1}"] = 1.0 + 0.1 * jax.random.normal(next(keys), (cout,), jnp.float32)
        params[f"beta{i + 1}"] = 0.1 * jax.random.normal(next(keys), (cout,), jnp.float32)
    params["w_final"] = 0.1 * jax.random.normal(
        next(keys), (1, conv_dim * 2 ** (num_layer - 1), 4, 4), jnp.float32)
    return params


if __name__ == "__main__":
    fwd = jax.jit(d_forward, static_argnums=2)

    def check(out, ref, tol=7e-2):
        # Mixed-precision (bf16 MXU operands + bf16 activations) vs f32 reference.
        scale = max(float(jnp.max(jnp.abs(ref))), 1.0)
        return float(jnp.max(jnp.abs(out - ref))) <= tol * scale

    input_dim, conv_dim = 3, 8
    key = jax.random.PRNGKey(0)
    k_x, k_p, k_x2, k_p2 = jax.random.split(key, 4)

    # D(input_dim=3, conv_dim=8, num_layer=2) on 16x16 inputs:
    # 16 -> (k4,s2,p1) 8 -> (k4,s2,p1) 4 -> (k4,s1,p0) 1   => output (2, 1, 1, 1)
    x = jax.random.normal(k_x, (2, input_dim, 16, 16), jnp.float32)
    params = init_params(k_p, input_dim, conv_dim, 2)
    out = jax.block_until_ready(fwd(x, params, 2))
    ref = jax.block_until_ready(d_forward_ref(x, params, 2))
    assert out.shape == ref.shape == (2, 1, 1, 1)
    assert check(out, ref), "num_layer=2 mismatch vs reference"

    # Second config exercises the general num_layer>=3 path (deferred BN affine
    # applied in jnp between two padded convs) and a longer layer chain.
    x2 = jax.random.normal(k_x2, (2, input_dim, 32, 32), jnp.float32)
    params2 = init_params(k_p2, input_dim, conv_dim, 3)
    out2 = jax.block_until_ready(fwd(x2, params2, 3))
    ref2 = jax.block_until_ready(d_forward_ref(x2, params2, 3))
    assert out2.shape == ref2.shape == (2, 1, 1, 1)
    assert check(out2, ref2), "num_layer=3 mismatch vs reference"

    print("KERNEL_OK")
</pallas_src>

<mosaic_0001>
module attributes {stable_mosaic.version = 11 : i64} {
  func.func @_fused_conv_kernel(%arg0: i32, %arg1: memref<128x128xbf16, #tpu.memory_space<vmem>>, %arg2: memref<128x128xbf16, #tpu.memory_space<vmem>>, %arg3: memref<128x128xbf16, #tpu.memory_space<vmem>>) attributes {dimension_semantics = [#tpu.dimension_semantics<parallel>], iteration_bounds = array<i64: 1>, scalar_prefetch = 0 : i64, scratch_operands = 0 : i64, tpu.core_type = #tpu.core_type<tc>, window_params = [{transform_indices = @transform_0, window_bounds = array<i64: 128, 128>}, {pipeline_mode = #tpu.pipeline_mode<synchronous>, transform_indices = @transform_1, window_bounds = array<i64: 128, 128>}, {transform_indices = @transform_2, window_bounds = array<i64: 128, 128>}]} {
    %c0 = arith.constant 0 : index
    %c0_0 = arith.constant 0 : index
    %0 = vector.load %arg1[%c0, %c0_0] : memref<128x128xbf16, #tpu.memory_space<vmem>>, vector<128x128xbf16>
    %c0_1 = arith.constant 0 : index
    %c0_2 = arith.constant 0 : index
    %1 = vector.load %arg2[%c0_1, %c0_2] : memref<128x128xbf16, #tpu.memory_space<vmem>>, vector<128x128xbf16>
    %cst = arith.constant dense<0.000000e+00> : vector<128x128xf32>
    %2 = tpu.matmul %0, %1, %cst {dimension_numbers = #tpu.dot_dimension_numbers<[1], [0], [0], [1], [0, 0, 1, 1], [], []>} : vector<128x128xbf16>, vector<128x128xbf16>, vector<128x128xf32> -> vector<128x128xf32>
    %cst_3 = arith.constant 0.000000e+00 : f32
    %3 = vector.broadcast %cst_3 : f32 to vector<128x128xf32>
    %4 = arith.cmpf oge, %2, %3 : vector<128x128xf32>
    %cst_4 = arith.constant 5.000000e-02 : f32
    %5 = vector.broadcast %cst_4 : f32 to vector<128x128xf32>
    %6 = arith.mulf %5, %2 : vector<128x128xf32>
    %7 = arith.select %4, %2, %6 : vector<128x128xi1>, vector<128x128xf32>
    %8 = arith.truncf %7 : vector<128x128xf32> to vector<128x128xbf16>
    %c0_5 = arith.constant 0 : index
    %c0_6 = arith.constant 0 : index
    %9 = vector.load %arg3[%c0_5, %c0_6] : memref<128x128xbf16, #tpu.memory_space<vmem>>, vector<128x128xbf16>
    tpu.vector_store %arg3[%c0_5, %c0_6], %8 {strides = array<i32>} : memref<128x128xbf16, #tpu.memory_space<vmem>>, vector<128x128xbf16>,
    return
  }
  func.func @transform_0(%arg0: i32) -> (i32, i32) {
    %c0_i32 = arith.constant 0 : i32
    %c0_i32_0 = arith.constant 0 : i32
    return %arg0, %c0_i32 : i32, i32
  }
  func.func @transform_1(%arg0: i32) -> (i32, i32) {
    %c0_i32 = arith.constant 0 : i32
    %c0_i32_0 = arith.constant 0 : i32
    %c0_i32_1 = arith.constant 0 : i32
    return %c0_i32, %c0_i32_0 : i32, i32
  }
  func.func @transform_2(%arg0: i32) -> (i32, i32) {
    %c0_i32 = arith.constant 0 : i32
    %c0_i32_0 = arith.constant 0 : i32
    return %arg0, %c0_i32 : i32, i32
  }
}

module attributes {stable_mosaic.version = 11 : i64} {
  func.func @_fused_conv_kernel(%arg0: i32, %arg1: memref<32x128xbf16, #tpu.memory_space<vmem>>, %arg2: memref<128x128xbf16, #tpu.memory_space<vmem>>, %arg3: memref<32x128xbf16, #tpu.memory_space<vmem>>, %arg4: memref<8x128xf32, #tpu.memory_space<vmem>>, %arg5: memref<8x128xf32, #tpu.memory_space<vmem>>) attributes {dimension_semantics = [#tpu.dimension_semantics<parallel>], iteration_bounds = array<i64: 1>, scalar_prefetch = 0 : i64, scratch_operands = 0 : i64, tpu.core_type = #tpu.core_type<tc>, window_params = [{transform_indices = @transform_0, window_bounds = array<i64: 32, 128>}, {pipeline_mode = #tpu.pipeline_mode<synchronous>, transform_indices = @transform_1, window_bounds = array<i64: 128, 128>}, {transform_indices = @transform_2, window_bounds = array<i64: 32, 128>}, {transform_indices = @transform_3, window_bounds = array<i64: 8, 128>}, {transform_indices = @transform_4, window_bounds = array<i64: 8, 128>}]} {
    %c0 = arith.constant 0 : index
    %c0_0 = arith.constant 0 : index
    %0 = vector.load %arg1[%c0, %c0_0] : memref<32x128xbf16, #tpu.memory_space<vmem>>, vector<32x128xbf16>
    %c0_1 = arith.constant 0 : index
    %c0_2 = arith.constant 0 : index
    %1 = vector.load %arg2[%c0_1, %c0_2] : memref<128x128xbf16, #tpu.memory_space<vmem>>, vector<128x128xbf16>
    %cst = arith.constant dense<0.000000e+00> : vector<32x128xf32>
    %2 = tpu.matmul %0, %1, %cst {dimension_numbers = #tpu.dot_dimension_numbers<[1], [0], [0], [1], [0, 0, 1, 1], [], []>} : vector<32x128xbf16>, vector<128x128xbf16>, vector<32x128xf32> -> vector<32x128xf32>
    %cst_3 = arith.constant 0.000000e+00 : f32
    %3 = vector.broadcast %cst_3 : f32 to vector<8x128xf32>
    %cst_4 = arith.constant 0.000000e+00 : f32
    %4 = vector.broadcast %cst_4 : f32 to vector<8x128xf32>
    %5 = vector.extract_strided_slice %2 {offsets = [0, 0], sizes = [8, 128], strides = [1, 1]} : vector<32x128xf32> to vector<8x128xf32>
    %6 = arith.addf %3, %5 : vector<8x128xf32>
    %7 = arith.mulf %5, %5 : vector<8x128xf32>
    %8 = arith.addf %4, %7 : vector<8x128xf32>
    %9 = vector.extract_strided_slice %2 {offsets = [8, 0], sizes = [8, 128], strides = [1, 1]} : vector<32x128xf32> to vector<8x128xf32>
    %10 = arith.addf %6, %9 : vector<8x128xf32>
    %11 = arith.mulf %9, %9 : vector<8x128xf32>
    %12 = arith.addf %8, %11 : vector<8x128xf32>
    %13 = vector.extract_strided_slice %2 {offsets = [16, 0], sizes = [8, 128], strides = [1, 1]} : vector<32x128xf32> to vector<8x128xf32>
    %14 = arith.addf %10, %13 : vector<8x128xf32>
    %15 = arith.mulf %13, %13 : vector<8x128xf32>
    %16 = arith.addf %12, %15 : vector<8x128xf32>
    %17 = vector.extract_strided_slice %2 {offsets = [24, 0], sizes = [8, 128], strides = [1, 1]} : vector<32x128xf32> to vector<8x128xf32>
    %18 = arith.addf %14, %17 : vector<8x128xf32>
    %19 = arith.mulf %17, %17 : vector<8x128xf32>
    %20 = arith.addf %16, %19 : vector<8x128xf32>
    %c0_5 = arith.constant 0 : index
    %c0_6 = arith.constant 0 : index
    %21 = vector.load %arg4[%c0_5, %c0_6] : memref<8x128xf32, #tpu.memory_space<vmem>>, vector<8x128xf32>
    tpu.vector_store %arg4[%c0_5, %c0_6], %18 {strides = array<i32>} : memref<8x128xf32, #tpu.memory_space<vmem>>, vector<8x128xf32>,
    %c0_7 = arith.constant 0 : index
    %c0_8 = arith.constant 0 : index
    %22 = vector.load %arg5[%c0_7, %c0_8] : memref<8x128xf32, #tpu.memory_space<vmem>>, vector<8x128xf32>
    tpu.vector_store %arg5[%c0_7, %c0_8], %20 {strides = array<i32>} : memref<8x128xf32, #tpu.memory_space<vmem>>, vector<8x128xf32>,
    %23 = arith.truncf %2 : vector<32x128xf32> to vector<32x128xbf16>
    %c0_9 = arith.constant 0 : index
    %c0_10 = arith.constant 0 : index
    %24 = vector.load %arg3[%c0_9, %c0_10] : memref<32x128xbf16, #tpu.memory_space<vmem>>, vector<32x128xbf16>
    tpu.vector_store %arg3[%c0_9, %c0_10], %23 {strides = array<i32>} : memref<32x128xbf16, #tpu.memory_space<vmem>>, vector<32x128xbf16>,
    return
  }
  func.func @transform_0(%arg0: i32) -> (i32, i32) {
    %c0_i32 = arith.constant 0 : i32
    %c0_i32_0 = arith.constant 0 : i32
    return %arg0, %c0_i32 : i32, i32
  }
  func.func @transform_1(%arg0: i32) -> (i32, i32) {
    %c0_i32 = arith.constant 0 : i32
    %c0_i32_0 = arith.constant 0 : i32
    %c0_i32_1 = arith.constant 0 : i32
    return %c0_i32, %c0_i32_0 : i32, i32
  }
  func.func @transform_2(%arg0: i32) -> (i32, i32) {
    %c0_i32 = arith.constant 0 : i32
    %c0_i32_0 = arith.constant 0 : i32
    return %arg0, %c0_i32 : i32, i32
  }
  func.func @transform_3(%arg0: i32) -> (i32, i32) {
    %c0_i32 = arith.constant 0 : i32
    %c0_i32_0 = arith.constant 0 : i32
    return %arg0, %c0_i32 : i32, i32
  }
  func.func @transform_4(%arg0: i32) -> (i32, i32) {
    %c0_i32 = arith.constant 0 : i32
    %c0_i32_0 = arith.constant 0 : i32
    return %arg0, %c0_i32 : i32, i32
  }
}

module attributes {stable_mosaic.version = 11 : i64} {
  func.func @_fused_conv_kernel(%arg0: i32, %arg1: memref<2x256xbf16, #tpu.memory_space<vmem>>, %arg2: memref<256x128xbf16, #tpu.memory_space<vmem>>, %arg3: memref<1x256xf32, #tpu.memory_space<vmem>>, %arg4: memref<1x256xf32, #tpu.memory_space<vmem>>, %arg5: memref<2x128xf32, #tpu.memory_space<vmem>>) attributes {dimension_semantics = [#tpu.dimension_semantics<parallel>], iteration_bounds = array<i64: 1>, scalar_prefetch = 0 : i64, scratch_operands = 0 : i64, tpu.core_type = #tpu.core_type<tc>, window_params = [{transform_indices = @transform_0, window_bounds = array<i64: 2, 256>}, {pipeline_mode = #tpu.pipeline_mode<synchronous>, transform_indices = @transform_1, window_bounds = array<i64: 256, 128>}, {pipeline_mode = #tpu.pipeline_mode<synchronous>, transform_indices = @transform_2, window_bounds = array<i64: 1, 256>}, {pipeline_mode = #tpu.pipeline_mode<synchronous>, transform_indices = @transform_3, window_bounds = array<i64: 1, 256>}, {transform_indices = @transform_4, window_bounds = array<i64: 2, 128>}]} {
    %c0 = arith.constant 0 : index
    %c0_0 = arith.constant 0 : index
    %0 = vector.load %arg1[%c0, %c0_0] : memref<2x256xbf16, #tpu.memory_space<vmem>>, vector<2x256xbf16>
    %1 = arith.extf %0 : vector<2x256xbf16> to vector<2x256xf32>
    %c0_1 = arith.constant 0 : index
    %c0_2 = arith.constant 0 : index
    %2 = vector.load %arg3[%c0_1, %c0_2] : memref<1x256xf32, #tpu.memory_space<vmem>>, vector<1x256xf32>
    %3 = vector.broadcast %2 : vector<1x256xf32> to vector<2x256xf32>
    %4 = arith.mulf %1, %3 : vector<2x256xf32>
    %c0_3 = arith.constant 0 : index
    %c0_4 = arith.constant 0 : index
    %5 = vector.load %arg4[%c0_3, %c0_4] : memref<1x256xf32, #tpu.memory_space<vmem>>, vector<1x256xf32>
    %6 = vector.broadcast %5 : vector<1x256xf32> to vector<2x256xf32>
    %7 = arith.addf %4, %6 : vector<2x256xf32>
    %cst = arith.constant 0.000000e+00 : f32
    %8 = vector.broadcast %cst : f32 to vector<2x256xf32>
    %9 = arith.cmpf oge, %7, %8 : vector<2x256xf32>
    %cst_5 = arith.constant 5.000000e-02 : f32
    %10 = vector.broadcast %cst_5 : f32 to vector<2x256xf32>
    %11 = arith.mulf %10, %7 : vector<2x256xf32>
    %12 = arith.select %9, %7, %11 : vector<2x256xi1>, vector<2x256xf32>
    %13 = arith.truncf %12 : vector<2x256xf32> to vector<2x256xbf16>
    %c0_6 = arith.constant 0 : index
    %c0_7 = arith.constant 0 : index
    %14 = vector.load %arg2[%c0_6, %c0_7] : memref<256x128xbf16, #tpu.memory_space<vmem>>, vector<256x128xbf16>
    %cst_8 = arith.constant dense<0.000000e+00> : vector<2x128xf32>
    %15 = tpu.matmul %13, %14, %cst_8 {dimension_numbers = #tpu.dot_dimension_numbers<[1], [0], [0], [1], [0, 0, 1, 1], [], []>} : vector<2x256xbf16>, vector<256x128xbf16>, vector<2x128xf32> -> vector<2x128xf32>
    %c0_9 = arith.constant 0 : index
    %c0_10 = arith.constant 0 : index
    %16 = vector.load %arg5[%c0_9, %c0_10] : memref<2x128xf32, #tpu.memory_space<vmem>>, vector<2x128xf32>
    tpu.vector_store %arg5[%c0_9, %c0_10], %15 {strides = array<i32>} : memref<2x128xf32, #tpu.memory_space<vmem>>, vector<2x128xf32>,
    return
  }
  func.func @transform_0(%arg0: i32) -> (i32, i32) {
    %c0_i32 = arith.constant 0 : i32
    %c0_i32_0 = arith.constant 0 : i32
    return %arg0, %c0_i32 : i32, i32
  }
  func.func @transform_1(%arg0: i32) -> (i32, i32) {
    %c0_i32 = arith.constant 0 : i32
    %c0_i32_0 = arith.constant 0 : i32
    %c0_i32_1 = arith.constant 0 : i32
    return %c0_i32, %c0_i32_0 : i32, i32
  }
  func.func @transform_2(%arg0: i32) -> (i32, i32) {
    %c0_i32 = arith.constant 0 : i32
    %c0_i32_0 = arith.constant 0 : i32
    %c0_i32_1 = arith.constant 0 : i32
    return %c0_i32, %c0_i32_0 : i32, i32
  }
  func.func @transform_3(%arg0: i32) -> (i32, i32) {
    %c0_i32 = arith.constant 0 : i32
    %c0_i32_0 = arith.constant 0 : i32
    %c0_i32_1 = arith.constant 0 : i32
    return %c0_i32, %c0_i32_0 : i32, i32
  }
  func.func @transform_4(%arg0: i32) -> (i32, i32) {
    %c0_i32 = arith.constant 0 : i32
    %c0_i32_0 = arith.constant 0 : i32
    return %arg0, %c0_i32 : i32, i32
  }
}

</mosaic_0001>

<llo_original>
// kernel: d_forward.3
$region0: #{d_forward.3}
  #allocation0 [shape = 'u32[]', space=smem, size = 0x4, offset = 0x4, fixed_abs, tag = 'smem constant byte address 0x4 - core index']
  #allocation1 [shape = 'u32[144,128]{1,0:T(1,128)}', space=vmem, size = 0x12000, scoped, tag = 'internal scratch']
  %s0 = inlined_call_operand.vmem [shape: bf16[128,128], index: 0, kind: input, shape index: {}]
  %s1 = inlined_call_operand.vmem [shape: bf16[128,128], index: 1, kind: input, shape index: {}]
  %s2 = inlined_call_operand.vmem [shape: bf16[128,128], index: 2, kind: output, shape index: {}]
  %s3 = sld [smem:[#allocation0]]
  $region18: #{d_forward.3} parent=0
    _
  %s5 = ssub.s32 1, %s3
  %s6 = scalar_select 0, %s5, %s3
  // Predicated region
  $region2: #{d_forward.3} parent=0 // pred_check
    _
  $region3: #{d_forward.3} parent=0 // pred_check_branch
    %8 = sbr.rel (0) target = $region5
  $region4: #{d_forward.3} parent=0 // pred_region
    _
  $region5: #{d_forward.3} parent=0 // pred_fallthru
    _
  // Predicated region
  $region6: #{d_forward.3} parent=0 // pred_check
    _
  $region7: #{d_forward.3} parent=0 // pred_check_branch
    %10 = sbr.rel (0) target = $region9
  $region8: #{d_forward.3} parent=0 // pred_region
    _
  $region9: #{d_forward.3} parent=0 // pred_fallthru
    _
  %v12 = vld [vmem:[%s0] sm:$0xf]
  %v13 = vld [vmem:[%s0 + $0x4] sm:$0xf]
  %v14 = vld [vmem:[%s0 + $0x8] sm:$0xf]
  %v15 = vld [vmem:[%s0 + $0xc] sm:$0xf]
  %v16 = vld [vmem:[%s0 + $0x10] sm:$0xf]
  %v17 = vld [vmem:[%s0 + $0x14] sm:$0xf]
  %v18 = vld [vmem:[%s0 + $0x18] sm:$0xf]
  %v19 = vld [vmem:[%s0 + $0x1c] sm:$0xf]
  %v20 = vld [vmem:[%s0 + $0x20] sm:$0xf]
  %v21 = vld [vmem:[%s0 + $0x24] sm:$0xf]
  %v22 = vld [vmem:[%s0 + $0x28] sm:$0xf]
  %v23 = vld [vmem:[%s0 + $0x2c] sm:$0xf]
  %v24 = vld [vmem:[%s0 + $0x30] sm:$0xf]
  %v25 = vld [vmem:[%s0 + $0x34] sm:$0xf]
  %v26 = vld [vmem:[%s0 + $0x38] sm:$0xf]
  %v27 = vld [vmem:[%s0 + $0x3c] sm:$0xf]
  %v28 = vld [vmem:[%s1] sm:$0xf]
  %v29 = vld [vmem:[%s1 + $0x4] sm:$0xf]
  %v30 = vld [vmem:[%s1 + $0x8] sm:$0xf]
  %v31 = vld [vmem:[%s1 + $0xc] sm:$0xf]
  %v32 = vld [vmem:[%s1 + $0x10] sm:$0xf]
  %v33 = vld [vmem:[%s1 + $0x14] sm:$0xf]
  %v34 = vld [vmem:[%s1 + $0x18] sm:$0xf]
  %v35 = vld [vmem:[%s1 + $0x1c] sm:$0xf]
  %v36 = vld [vmem:[%s1 + $0x20] sm:$0xf]
  %v37 = vld [vmem:[%s1 + $0x24] sm:$0xf]
  %v38 = vld [vmem:[%s1 + $0x28] sm:$0xf]
  %v39 = vld [vmem:[%s1 + $0x2c] sm:$0xf]
  %v40 = vld [vmem:[%s1 + $0x30] sm:$0xf]
  %v41 = vld [vmem:[%s1 + $0x34] sm:$0xf]
  %v42 = vld [vmem:[%s1 + $0x38] sm:$0xf]
  %v43 = vld [vmem:[%s1 + $0x3c] sm:$0xf]
  %v60 = vunpack.c.l.b16 %v12
  %v61 = vunpack.c.l.b16 %v13
  %v62 = vunpack.c.l.b16 %v14
  %v63 = vunpack.c.l.b16 %v15
  %v64 = vunpack.c.l.b16 %v16
  %v65 = vunpack.c.l.b16 %v17
  %v66 = vunpack.c.l.b16 %v18
  %v67 = vunpack.c.l.b16 %v19
  %v68 = vunpack.c.l.b16 %v20
  %v69 = vunpack.c.l.b16 %v21
  %v70 = vunpack.c.l.b16 %v22
  %v71 = vunpack.c.l.b16 %v23
  %v72 = vunpack.c.l.b16 %v24
  %v73 = vunpack.c.l.b16 %v25
  %v74 = vunpack.c.l.b16 %v26
  %v75 = vunpack.c.l.b16 %v27
  %v76 = vpack.c.b16 %v61, %v60
  %v77 = vpack.c.b16 %v63, %v62
  %v78 = vpack.c.b16 %v65, %v64
  %v79 = vpack.c.b16 %v67, %v66
  %v80 = vpack.c.b16 %v69, %v68
  %v81 = vpack.c.b16 %v71, %v70
  %v82 = vpack.c.b16 %v73, %v72
  %v83 = vpack.c.b16 %v75, %v74
  %v108 = vunpack.c.l.b16 %v28
  %v109 = vunpack.c.l.b16 %v29
  %v110 = vunpack.c.l.b16 %v30
  %v111 = vunpack.c.l.b16 %v31
  %v112 = vunpack.c.l.b16 %v32
  %v113 = vunpack.c.l.b16 %v33
  %v114 = vunpack.c.l.b16 %v34
  %v115 = vunpack.c.l.b16 %v35
  %v116 = vunpack.c.l.b16 %v36
  %v117 = vunpack.c.l.b16 %v37
  %v118 = vunpack.c.l.b16 %v38
  %v119 = vunpack.c.l.b16 %v39
  %v120 = vunpack.c.l.b16 %v40
  %v121 = vunpack.c.l.b16 %v41
  %v122 = vunpack.c.l.b16 %v42
  %v123 = vunpack.c.l.b16 %v43
  %v124 = vpack.c.b16 %v109, %v108
  %v125 = vpack.c.b16 %v111, %v110
  %v126 = vpack.c.b16 %v113, %v112
  %v127 = vpack.c.b16 %v115, %v114
  %v128 = vpack.c.b16 %v117, %v116
  %v129 = vpack.c.b16 %v119, %v118
  %v130 = vpack.c.b16 %v121, %v120
  %v131 = vpack.c.b16 %v123, %v122
  %140 = vmatprep.subr.bf16.mxu0 0
  %141 = vmatpush1.bf16.msra.mxu0 %v124
  %142 = vmatprep.subr.bf16.mxu0 0
  %143 = vmatpush1.bf16.msra.mxu0 %v125
  %144 = vmatprep.subr.bf16.mxu0 0
  %145 = vmatpush1.bf16.msra.mxu0 %v126
  %146 = vmatprep.subr.bf16.mxu0 0
  %147 = vmatpush1.bf16.msra.mxu0 %v127
  %148 = vmatprep.subr.bf16.mxu0 0
  %149 = vmatpush1.bf16.msra.mxu0 %v128
  %150 = vmatprep.subr.bf16.mxu0 0
  %151 = vmatpush1.bf16.msra.mxu0 %v129
  %152 = vmatprep.subr.bf16.mxu0 0
  %153 = vmatpush1.bf16.msra.mxu0 %v130
  %154 = vmatprep.subr.bf16.mxu0 0
  %155 = vmatpush1.bf16.msra.mxu0 %v131
  %156 = vmatprep.subr.bf16.mxu0 0
  %157 = vmatpush1.bf16.msra.mxu0 0
  %158 = vmatprep.subr.bf16.mxu0 0
  %159 = vmatpush1.bf16.msra.mxu0 0
  %160 = vmatprep.subr.bf16.mxu0 0
  %161 = vmatpush1.bf16.msra.mxu0 0
  %162 = vmatprep.subr.bf16.mxu0 0
  %163 = vmatpush1.bf16.msra.mxu0 0
  %164 = vmatprep.subr.bf16.mxu0 0
  %165 = vmatpush1.bf16.msra.mxu0 0
  %166 = vmatprep.subr.bf16.mxu0 0
  %167 = vmatpush1.bf16.msra.mxu0 0
  %168 = vmatprep.subr.bf16.mxu0 0
  %169 = vmatpush1.bf16.msra.mxu0 0
  %170 = vmatprep.subr.bf16.mxu0 0
  %171 = vmatpush1.bf16.msra.mxu0 0
  %172 = vmatprep.mubr.bf16.mxu0 0
  %173 = vmatmul.mubr.bf16.gmra.mrb[0].mxu0 %v76
  %v174 = vpop.f32.mrb[0].mxu0
  %v175 = vadd.f32 0.0, %v174
  %v176 = vpop.f32.mrb[0].mxu0
  %v177 = vpop.f32.mrb[0].mxu0
  %v178 = vadd.f32 0.0, %v177
  %v179 = vpop.f32.mrb[0].mxu0
  %180 = vmatprep.mubr.bf16.mxu0 0
  %181 = vmatmul.mubr.bf16.gmra.mrb[0].mxu0 %v77
  %v182 = vpop.f32.mrb[0].mxu0
  %v183 = vadd.f32 0.0, %v182
  %v184 = vpop.f32.mrb[0].mxu0
  %v185 = vpop.f32.mrb[0].mxu0
  %v186 = vadd.f32 0.0, %v185
  %v187 = vpop.f32.mrb[0].mxu0
  %188 = vmatprep.mubr.bf16.mxu0 0
  %189 = vmatmul.mubr.bf16.gmra.mrb[0].mxu0 %v78
  %v190 = vpop.f32.mrb[0].mxu0
  %v191 = vadd.f32 0.0, %v190
  %v192 = vpop.f32.mrb[0].mxu0
  %v193 = vpop.f32.mrb[0].mxu0
  %v194 = vadd.f32 0.0, %v193
  %v195 = vpop.f32.mrb[0].mxu0
  %196 = vmatprep.mubr.bf16.mxu0 0
  %197 = vmatmul.mubr.bf16.gmra.mrb[0].mxu0 %v79
  %v198 = vpop.f32.mrb[0].mxu0
  %v199 = vadd.f32 0.0, %v198
  %v200 = vpop.f32.mrb[0].mxu0
  %v201 = vpop.f32.mrb[0].mxu0
  %v202 = vadd.f32 0.0, %v201
  %v203 = vpop.f32.mrb[0].mxu0
  %204 = vmatprep.mubr.bf16.mxu0 0
  %205 = vmatmul.mubr.bf16.gmra.mrb[0].mxu0 %v80
  %v206 = vpop.f32.mrb[0].mxu0
  %v207 = vadd.f32 0.0, %v206
  %v208 = vpop.f32.mrb[0].mxu0
  %v209 = vpop.f32.mrb[0].mxu0
  %v210 = vadd.f32 0.0, %v209
  %v211 = vpop.f32.mrb[0].mxu0
  %212 = vmatprep.mubr.bf16.mxu0 0
  %213 = vmatmul.mubr.bf16.gmra.mrb[0].mxu0 %v81
  %v214 = vpop.f32.mrb[0].mxu0
  %v215 = vadd.f32 0.0, %v214
  %v216 = vpop.f32.mrb[0].mxu0
  %v217 = vpop.f32.mrb[0].mxu0
  %v218 = vadd.f32 0.0, %v217
  %v219 = vpop.f32.mrb[0].mxu0
  %220 = vmatprep.mubr.bf16.mxu0 0
  %221 = vmatmul.mubr.bf16.gmra.mrb[0].mxu0 %v82
  %v222 = vpop.f32.mrb[0].mxu0
  %v223 = vadd.f32 0.0, %v222
  %v224 = vpop.f32.mrb[0].mxu0
  %v225 = vpop.f32.mrb[0].mxu0
  %v226 = vadd.f32 0.0, %v225
  %v227 = vpop.f32.mrb[0].mxu0
  %228 = vmatprep.mubr.bf16.mxu0 0
  %229 = vmatmul.mubr.bf16.gmra.mrb[0].mxu0 %v83
  %v230 = vpop.f32.mrb[0].mxu0
  %v231 = vadd.f32 0.0, %v230
  %v232 = vpop.f32.mrb[0].mxu0
  %v233 = vpop.f32.mrb[0].mxu0
  %v234 = vadd.f32 0.0, %v233
  %v235 = vpop.f32.mrb[0].mxu0
  %236 = vdwg.mxu0
  %vm237 = vcmp.ge.f32.partialorder %v175, 0.0
  %vm238 = vcmp.ge.f32.partialorder %v178, 0.0
  %vm239 = vcmp.ge.f32.partialorder %v183, 0.0
  %vm240 = vcmp.ge.f32.partialorder %v186, 0.0
  %vm241 = vcmp.ge.f32.partialorder %v191, 0.0
  %vm242 = vcmp.ge.f32.partialorder %v194, 0.0
  %vm243 = vcmp.ge.f32.partialorder %v199, 0.0
  %vm244 = vcmp.ge.f32.partialorder %v202, 0.0
  %vm245 = vcmp.ge.f32.partialorder %v207, 0.0
  %vm246 = vcmp.ge.f32.partialorder %v210, 0.0
  %vm247 = vcmp.ge.f32.partialorder %v215, 0.0
  %vm248 = vcmp.ge.f32.partialorder %v218, 0.0
  %vm249 = vcmp.ge.f32.partialorder %v223, 0.0
  %vm250 = vcmp.ge.f32.partialorder %v226, 0.0
  %vm251 = vcmp.ge.f32.partialorder %v231, 0.0
  %vm252 = vcmp.ge.f32.partialorder %v234, 0.0
  %v253 = vmul.f32 %v175, 0.05
  %v254 = vmul.f32 %v178, 0.05
  %v255 = vmul.f32 %v183, 0.05
  %v256 = vmul.f32 %v186, 0.05
  %v257 = vmul.f32 %v191, 0.05
  %v258 = vmul.f32 %v194, 0.05
  %v259 = vmul.f32 %v199, 0.05
  %v260 = vmul.f32 %v202, 0.05
  %v261 = vmul.f32 %v207, 0.05
  %v262 = vmul.f32 %v210, 0.05
  %v263 = vmul.f32 %v215, 0.05
  %v264 = vmul.f32 %v218, 0.05
  %v265 = vmul.f32 %v223, 0.05
  %v266 = vmul.f32 %v226, 0.05
  %v267 = vmul.f32 %v231, 0.05
  %v268 = vmul.f32 %v234, 0.05
  %v269 = vsel %vm237, %v175, %v253
  %v270 = vsel %vm238, %v178, %v254
  %v271 = vsel %vm239, %v183, %v255
  %v272 = vsel %vm240, %v186, %v256
  %v273 = vsel %vm241, %v191, %v257
  %v274 = vsel %vm242, %v194, %v258
  %v275 = vsel %vm243, %v199, %v259
  %v276 = vsel %vm244, %v202, %v260
  %v277 = vsel %vm245, %v207, %v261
  %v278 = vsel %vm246, %v210, %v262
  %v279 = vsel %vm247, %v215, %v263
  %v280 = vsel %vm248, %v218, %v264
  %v281 = vsel %vm249, %v223, %v265
  %v282 = vsel %vm250, %v226, %v266
  %v283 = vsel %vm251, %v231, %v267
  %v284 = vsel %vm252, %v234, %v268
  %v285 = vpack.c.bf16 %v270, %v269
  %v286 = vpack.c.bf16 %v272, %v271
  %v287 = vpack.c.bf16 %v274, %v273
  %v288 = vpack.c.bf16 %v276, %v275
  %v289 = vpack.c.bf16 %v278, %v277
  %v290 = vpack.c.bf16 %v280, %v279
  %v291 = vpack.c.bf16 %v282, %v281
  %v292 = vpack.c.bf16 %v284, %v283
  %v301 = vunpack.c.l.b16 %v285
  %v302 = vunpack.c.h.b16 %v285
  %v303 = vunpack.c.l.b16 %v286
  %v304 = vunpack.c.h.b16 %v286
  %v305 = vunpack.c.l.b16 %v287
  %v306 = vunpack.c.h.b16 %v287
  %v307 = vunpack.c.l.b16 %v288
  %v308 = vunpack.c.h.b16 %v288
  %v309 = vunpack.c.l.b16 %v289
  %v310 = vunpack.c.h.b16 %v289
  %v311 = vunpack.c.l.b16 %v290
  %v312 = vunpack.c.h.b16 %v290
  %v313 = vunpack.c.l.b16 %v291
  %v314 = vunpack.c.h.b16 %v291
  %v315 = vunpack.c.l.b16 %v292
  %v316 = vunpack.c.h.b16 %v292
  %v317 = vpack.c.b16 %v301, %v301
  %v318 = vpack.c.b16 %v302, %v302
  %v319 = vpack.c.b16 %v303, %v303
  %v320 = vpack.c.b16 %v304, %v304
  %v321 = vpack.c.b16 %v305, %v305
  %v322 = vpack.c.b16 %v306, %v306
  %v323 = vpack.c.b16 %v307, %v307
  %v324 = vpack.c.b16 %v308, %v308
  %v325 = vpack.c.b16 %v309, %v309
  %v326 = vpack.c.b16 %v310, %v310
  %v327 = vpack.c.b16 %v311, %v311
  %v328 = vpack.c.b16 %v312, %v312
  %v329 = vpack.c.b16 %v313, %v313
  %v330 = vpack.c.b16 %v314, %v314
  %v331 = vpack.c.b16 %v315, %v315
  %v332 = vpack.c.b16 %v316, %v316
  %349 = vst [vmem:[%s2] sm:$0xf] %v317
  %350 = vst [vmem:[%s2 + $0x4] sm:$0xf] %v318
  %351 = vst [vmem:[%s2 + $0x8] sm:$0xf] %v319
  %352 = vst [vmem:[%s2 + $0xc] sm:$0xf] %v320
  %353 = vst [vmem:[%s2 + $0x10] sm:$0xf] %v321
  %354 = vst [vmem:[%s2 + $0x14] sm:$0xf] %v322
  %355 = vst [vmem:[%s2 + $0x18] sm:$0xf] %v323
  %356 = vst [vmem:[%s2 + $0x1c] sm:$0xf] %v324
  %357 = vst [vmem:[%s2 + $0x20] sm:$0xf] %v325
  %358 = vst [vmem:[%s2 + $0x24] sm:$0xf] %v326
  %359 = vst [vmem:[%s2 + $0x28] sm:$0xf] %v327
  %360 = vst [vmem:[%s2 + $0x2c] sm:$0xf] %v328
  %361 = vst [vmem:[%s2 + $0x30] sm:$0xf] %v329
  %362 = vst [vmem:[%s2 + $0x34] sm:$0xf] %v330
  %363 = vst [vmem:[%s2 + $0x38] sm:$0xf] %v331
  %364 = vst [vmem:[%s2 + $0x3c] sm:$0xf] %v332
  // Predicated region
  $region10: #{d_forward.3} parent=0 // pred_check
    _
  $region11: #{d_forward.3} parent=0 // pred_check_branch
    %366 = sbr.rel (0) target = $region13
  $region12: #{d_forward.3} parent=0 // pred_region
    _
  $region13: #{d_forward.3} parent=0 // pred_fallthru
    _
  // Predicated region
  $region14: #{d_forward.3} parent=0 // pred_check
    _
  $region15: #{d_forward.3} parent=0 // pred_check_branch
    %368 = sbr.rel (0) target = $region17
  $region16: #{d_forward.3} parent=0 // pred_region
    _
  $region17: #{d_forward.3} parent=0 // pred_fallthru
    _

// kernel: d_forward.4
$region0: #{d_forward.4}
  #allocation0 [shape = 'u32[]', space=smem, size = 0x4, offset = 0x4, fixed_abs, tag = 'smem constant byte address 0x4 - core index']
  #allocation1 [shape = 'u32[144,128]{1,0:T(1,128)}', space=vmem, size = 0x12000, scoped, tag = 'internal scratch']
  %s0 = inlined_call_operand.vmem [shape: bf16[32,128], index: 0, kind: input, shape index: {}]
  %s1 = inlined_call_operand.vmem [shape: bf16[128,128], index: 1, kind: input, shape index: {}]
  %s2 = inlined_call_operand.vmem [shape: bf16[32,128], index: 2, kind: output, shape index: {0}]
  %s3 = inlined_call_operand.vmem [shape: f32[8,128], index: 3, kind: output, shape index: {1}]
  %s4 = inlined_call_operand.vmem [shape: f32[8,128], index: 4, kind: output, shape index: {2}]
  %5 = xla_tuple %s2, %s3, %s4
  %s6 = sld [smem:[#allocation0]]
  $region34: #{d_forward.4} parent=0
    _
  %s8 = ssub.s32 1, %s6
  %s9 = scalar_select 0, %s8, %s6
  // Predicated region
  $region2: #{d_forward.4} parent=0 // pred_check
    _
  $region3: #{d_forward.4} parent=0 // pred_check_branch
    %11 = sbr.rel (0) target = $region5
  $region4: #{d_forward.4} parent=0 // pred_region
    _
  $region5: #{d_forward.4} parent=0 // pred_fallthru
    _
  // Predicated region
  $region6: #{d_forward.4} parent=0 // pred_check
    _
  $region7: #{d_forward.4} parent=0 // pred_check_branch
    %13 = sbr.rel (0) target = $region9
  $region8: #{d_forward.4} parent=0 // pred_region
    _
  $region9: #{d_forward.4} parent=0 // pred_fallthru
    _
  %v15 = vld [vmem:[%s0] sm:$0xf]
  %v16 = vld [vmem:[%s0 + $0x4] sm:$0xf]
  %v17 = vld [vmem:[%s0 + $0x8] sm:$0xf]
  %v18 = vld [vmem:[%s0 + $0xc] sm:$0xf]
  %v19 = vld [vmem:[%s1] sm:$0xf]
  %v20 = vld [vmem:[%s1 + $0x4] sm:$0xf]
  %v21 = vld [vmem:[%s1 + $0x8] sm:$0xf]
  %v22 = vld [vmem:[%s1 + $0xc] sm:$0xf]
  %v23 = vld [vmem:[%s1 + $0x10] sm:$0xf]
  %v24 = vld [vmem:[%s1 + $0x14] sm:$0xf]
  %v25 = vld [vmem:[%s1 + $0x18] sm:$0xf]
  %v26 = vld [vmem:[%s1 + $0x1c] sm:$0xf]
  %v27 = vld [vmem:[%s1 + $0x20] sm:$0xf]
  %v28 = vld [vmem:[%s1 + $0x24] sm:$0xf]
  %v29 = vld [vmem:[%s1 + $0x28] sm:$0xf]
  %v30 = vld [vmem:[%s1 + $0x2c] sm:$0xf]
  %v31 = vld [vmem:[%s1 + $0x30] sm:$0xf]
  %v32 = vld [vmem:[%s1 + $0x34] sm:$0xf]
  %v33 = vld [vmem:[%s1 + $0x38] sm:$0xf]
  %v34 = vld [vmem:[%s1 + $0x3c] sm:$0xf]
  %v39 = vunpack.c.l.b16 %v15
  %v40 = vunpack.c.l.b16 %v16
  %v41 = vunpack.c.l.b16 %v17
  %v42 = vunpack.c.l.b16 %v18
  %v43 = vpack.c.b16 %v40, %v39
  %v44 = vpack.c.b16 %v42, %v41
  %v63 = vunpack.c.l.b16 %v19
  %v64 = vunpack.c.l.b16 %v20
  %v65 = vunpack.c.l.b16 %v21
  %v66 = vunpack.c.l.b16 %v22
  %v67 = vunpack.c.l.b16 %v23
  %v68 = vunpack.c.l.b16 %v24
  %v69 = vunpack.c.l.b16 %v25
  %v70 = vunpack.c.l.b16 %v26
  %v71 = vunpack.c.l.b16 %v27
  %v72 = vunpack.c.l.b16 %v28
  %v73 = vunpack.c.l.b16 %v29
  %v74 = vunpack.c.l.b16 %v30
  %v75 = vunpack.c.l.b16 %v31
  %v76 = vunpack.c.l.b16 %v32
  %v77 = vunpack.c.l.b16 %v33
  %v78 = vunpack.c.l.b16 %v34
  %v79 = vpack.c.b16 %v64, %v63
  %v80 = vpack.c.b16 %v66, %v65
  %v81 = vpack.c.b16 %v68, %v67
  %v82 = vpack.c.b16 %v70, %v69
  %v83 = vpack.c.b16 %v72, %v71
  %v84 = vpack.c.b16 %v74, %v73
  %v85 = vpack.c.b16 %v76, %v75
  %v86 = vpack.c.b16 %v78, %v77
  %95 = vmatprep.subr.bf16.mxu0 0
  %96 = vmatpush1.bf16.msra.mxu0 %v79
  %97 = vmatprep.subr.bf16.mxu0 0
  %98 = vmatpush1.bf16.msra.mxu0 %v80
  %99 = vmatprep.subr.bf16.mxu0 0
  %100 = vmatpush1.bf16.msra.mxu0 %v81
  %101 = vmatprep.subr.bf16.mxu0 0
  %102 = vmatpush1.bf16.msra.mxu0 %v82
  %103 = vmatprep.subr.bf16.mxu0 0
  %104 = vmatpush1.bf16.msra.mxu0 %v83
  %105 = vmatprep.subr.bf16.mxu0 0
  %106 = vmatpush1.bf16.msra.mxu0 %v84
  %107 = vmatprep.subr.bf16.mxu0 0
  %108 = vmatpush1.bf16.msra.mxu0 %v85
  %109 = vmatprep.subr.bf16.mxu0 0
  %110 = vmatpush1.bf16.msra.mxu0 %v86
  %111 = vmatprep.subr.bf16.mxu0 0
  %112 = vmatpush1.bf16.msra.mxu0 0
  %113 = vmatprep.subr.bf16.mxu0 0
  %114 = vmatpush1.bf16.msra.mxu0 0
  %115 = vmatprep.subr.bf16.mxu0 0
  %116 = vmatpush1.bf16.msra.mxu0 0
  %117 = vmatprep.subr.bf16.mxu0 0
  %118 = vmatpush1.bf16.msra.mxu0 0
  %119 = vmatprep.subr.bf16.mxu0 0
  %120 = vmatpush1.bf16.msra.mxu0 0
  %121 = vmatprep.subr.bf16.mxu0 0
  %122 = vmatpush1.bf16.msra.mxu0 0
  %123 = vmatprep.subr.bf16.mxu0 0
  %124 = vmatpush1.bf16.msra.mxu0 0
  %125 = vmatprep.subr.bf16.mxu0 0
  %126 = vmatpush1.bf16.msra.mxu0 0
  %127 = vmatprep.mubr.bf16.mxu0 0
  %128 = vmatmul.mubr.bf16.gmra.mrb[0].mxu0 %v43
  %v129 = vpop.f32.mrb[0].mxu0
  %v130 = vadd.f32 0.0, %v129
  %v131 = vpop.f32.mrb[0].mxu0
  %v132 = vpop.f32.mrb[0].mxu0
  %v133 = vadd.f32 0.0, %v132
  %v134 = vpop.f32.mrb[0].mxu0
  %135 = vmatprep.mubr.bf16.mxu0 0
  %136 = vmatmul.mubr.bf16.gmra.mrb[0].mxu0 %v44
  %v137 = vpop.f32.mrb[0].mxu0
  %v138 = vadd.f32 0.0, %v137
  %v139 = vpop.f32.mrb[0].mxu0
  %v140 = vpop.f32.mrb[0].mxu0
  %v141 = vadd.f32 0.0, %v140
  %v142 = vpop.f32.mrb[0].mxu0
  %143 = vdwg.mxu0
  %v144 = vadd.f32 %v130, 0.0
  %v145 = vmul.f32 %v130, %v130
  %v146 = vadd.f32 %v145, 0.0
  %v147 = vadd.f32 %v144, %v133
  %v148 = vmul.f32 %v133, %v133
  %v149 = vadd.f32 %v146, %v148
  %v150 = vadd.f32 %v147, %v138
  %v151 = vmul.f32 %v138, %v138
  %v152 = vadd.f32 %v149, %v151
  %v153 = vadd.f32 %v150, %v141
  %v154 = vmul.f32 %v141, %v141
  %v155 = vadd.f32 %v152, %v154
  %156 = vst [vmem:[%s3] sm:$0xff] %v153
  %157 = vst [vmem:[%s4] sm:$0xff] %v155
  %v158 = vpack.c.bf16 %v133, %v130
  %v159 = vpack.c.bf16 %v141, %v138
  %v162 = vunpack.c.l.b16 %v158
  %v163 = vunpack.c.h.b16 %v158
  %v164 = vunpack.c.l.b16 %v159
  %v165 = vunpack.c.h.b16 %v159
  %v166 = vpack.c.b16 %v162, %v162
  %v167 = vpack.c.b16 %v163, %v163
  %v168 = vpack.c.b16 %v164, %v164
  %v169 = vpack.c.b16 %v165, %v165
  %174 = vst [vmem:[%s2] sm:$0xf] %v166
  %175 = vst [vmem:[%s2 + $0x4] sm:$0xf] %v167
  %176 = vst [vmem:[%s2 + $0x8] sm:$0xf] %v168
  %177 = vst [vmem:[%s2 + $0xc] sm:$0xf] %v169
  // Predicated region
  $region10: #{d_forward.4} parent=0 // pred_check
    _
  $region11: #{d_forward.4} parent=0 // pred_check_branch
    %179 = sbr.rel (0) target = $region13
  $region12: #{d_forward.4} parent=0 // pred_region
    _
  $region13: #{d_forward.4} parent=0 // pred_fallthru
    _
  // Predicated region
  $region14: #{d_forward.4} parent=0 // pred_check
    _
  $region15: #{d_forward.4} parent=0 // pred_check_branch
    %181 = sbr.rel (0) target = $region17
  $region16: #{d_forward.4} parent=0 // pred_region
    _
  $region17: #{d_forward.4} parent=0 // pred_fallthru
    _
  // Predicated region
  $region18: #{d_forward.4} parent=0 // pred_check
    _
  $region19: #{d_forward.4} parent=0 // pred_check_branch
    %183 = sbr.rel (0) target = $region21
  $region20: #{d_forward.4} parent=0 // pred_region
    _
  $region21: #{d_forward.4} parent=0 // pred_fallthru
    _
  // Predicated region
  $region22: #{d_forward.4} parent=0 // pred_check
    _
  $region23: #{d_forward.4} parent=0 // pred_check_branch
    %185 = sbr.rel (0) target = $region25
  $region24: #{d_forward.4} parent=0 // pred_region
    _
  $region25: #{d_forward.4} parent=0 // pred_fallthru
    _
  // Predicated region
  $region26: #{d_forward.4} parent=0 // pred_check
    _
  $region27: #{d_forward.4} parent=0 // pred_check_branch
    %187 = sbr.rel (0) target = $region29
  $region28: #{d_forward.4} parent=0 // pred_region
    _
  $region29: #{d_forward.4} parent=0 // pred_fallthru
    _
  // Predicated region
  $region30: #{d_forward.4} parent=0 // pred_check
    _
  $region31: #{d_forward.4} parent=0 // pred_check_branch
    %189 = sbr.rel (0) target = $region33
  $region32: #{d_forward.4} parent=0 // pred_region
    _
  $region33: #{d_forward.4} parent=0 // pred_fallthru
    _

// kernel: d_forward.5
$region0: #{d_forward.5}
  #allocation0 [shape = 'u32[]', space=smem, size = 0x4, offset = 0x4, fixed_abs, tag = 'smem constant byte address 0x4 - core index']
  #allocation1 [shape = 'u32[144,128]{1,0:T(1,128)}', space=vmem, size = 0x12000, scoped, tag = 'internal scratch']
  %s0 = inlined_call_operand.vmem [shape: bf16[2,256], index: 0, kind: input, shape index: {}]
  %s1 = inlined_call_operand.vmem [shape: bf16[256,128], index: 1, kind: input, shape index: {}]
  %s2 = inlined_call_operand.vmem [shape: f32[1,256], index: 2, kind: input, shape index: {}]
  %s3 = inlined_call_operand.vmem [shape: f32[1,256], index: 3, kind: input, shape index: {}]
  %s4 = inlined_call_operand.vmem [shape: f32[2,128], index: 4, kind: output, shape index: {}]
  %s5 = sld [smem:[#allocation0]]
  $region26: #{d_forward.5} parent=0
    _
  %s7 = ssub.s32 1, %s5
  %s8 = scalar_select 0, %s7, %s5
  // Predicated region
  $region2: #{d_forward.5} parent=0 // pred_check
    _
  $region3: #{d_forward.5} parent=0 // pred_check_branch
    %10 = sbr.rel (0) target = $region5
  $region4: #{d_forward.5} parent=0 // pred_region
    _
  $region5: #{d_forward.5} parent=0 // pred_fallthru
    _
  // Predicated region
  $region6: #{d_forward.5} parent=0 // pred_check
    _
  $region7: #{d_forward.5} parent=0 // pred_check_branch
    %12 = sbr.rel (0) target = $region9
  $region8: #{d_forward.5} parent=0 // pred_region
    _
  $region9: #{d_forward.5} parent=0 // pred_fallthru
    _
  // Predicated region
  $region10: #{d_forward.5} parent=0 // pred_check
    _
  $region11: #{d_forward.5} parent=0 // pred_check_branch
    %14 = sbr.rel (0) target = $region13
  $region12: #{d_forward.5} parent=0 // pred_region
    _
  $region13: #{d_forward.5} parent=0 // pred_fallthru
    _
  // Predicated region
  $region14: #{d_forward.5} parent=0 // pred_check
    _
  $region15: #{d_forward.5} parent=0 // pred_check_branch
    %16 = sbr.rel (0) target = $region17
  $region16: #{d_forward.5} parent=0 // pred_region
    _
  $region17: #{d_forward.5} parent=0 // pred_fallthru
    _
  %v18 = vld [vmem:[%s0] sm:$0x3]
  %v19 = vunpack.c.l.bf16 %v18
  %v20 = vld [vmem:[%s2] sm:$0x3]
  %v22 = vlaneseq
  %v23 = vshrl.u32 %v22, 7
  %v24 = vsub.s32 0, %v23
  %v25 = vrot.slane %v20, %v24
  %v26 = vlaneseq
  %v27 = vshrl.u32 %v26, 7
  %v28 = vsub.s32 1, %v27
  %v29 = vrot.slane %v20, %v28
  %v30 = vcombine.low %v25, %v29
  %v32 = vunpack.c.l.s4 1983009808
  %v33 = vunpack.c.0.s8 %v32
  %v34 = vlaneseq
  %v35 = vshrl.u32 %v34, 7
  %v36 = vsub.s32 %v33, %v35
  %v37 = vrot.slane %v30, %v36
  %v39 = vmul.f32 %v19, %v37
  %v40 = vld [vmem:[%s3] sm:$0x3]
  %v42 = vlaneseq
  %v43 = vshrl.u32 %v42, 7
  %v44 = vsub.s32 0, %v43
  %v45 = vrot.slane %v40, %v44
  %v46 = vlaneseq
  %v47 = vshrl.u32 %v46, 7
  %v48 = vsub.s32 1, %v47
  %v49 = vrot.slane %v40, %v48
  %v50 = vcombine.low %v45, %v49
  %v52 = vunpack.c.l.s4 1983009808
  %v53 = vunpack.c.0.s8 %v52
  %v54 = vlaneseq
  %v55 = vshrl.u32 %v54, 7
  %v56 = vsub.s32 %v53, %v55
  %v57 = vrot.slane %v50, %v56
  %v59 = vadd.f32 %v39, %v57
  %vm60 = vcmp.ge.f32.partialorder %v59, 0.0
  %v61 = vmul.f32 %v59, 0.05
  %v62 = vsel %vm60, %v59, %v61
  %v65 = vunpack.c.l.s4 1983009808
  %v66 = vunpack.c.0.s8 %v65
  %v67 = vlaneseq
  %v68 = vshrl.u32 %v67, 7
  %v69 = vsub.s32 %v66, %v68
  %v70 = vrot.slane %v62, %v69
  %v71 = vcombine.high %v70, %v70
  %v74 = vpack.c.bf16 %v70, %v70
  %v75 = vpack.c.bf16 %v71, %v71
  %v76 = vld [vmem:[%s1] sm:$0xf]
  %v77 = vld [vmem:[%s1 + $0x4] sm:$0xf]
  %v78 = vld [vmem:[%s1 + $0x8] sm:$0xf]
  %v79 = vld [vmem:[%s1 + $0xc] sm:$0xf]
  %v80 = vld [vmem:[%s1 + $0x10] sm:$0xf]
  %v81 = vld [vmem:[%s1 + $0x14] sm:$0xf]
  %v82 = vld [vmem:[%s1 + $0x18] sm:$0xf]
  %v83 = vld [vmem:[%s1 + $0x1c] sm:$0xf]
  %v84 = vld [vmem:[%s1 + $0x20] sm:$0xf]
  %v85 = vld [vmem:[%s1 + $0x24] sm:$0xf]
  %v86 = vld [vmem:[%s1 + $0x28] sm:$0xf]
  %v87 = vld [vmem:[%s1 + $0x2c] sm:$0xf]
  %v88 = vld [vmem:[%s1 + $0x30] sm:$0xf]
  %v89 = vld [vmem:[%s1 + $0x34] sm:$0xf]
  %v90 = vld [vmem:[%s1 + $0x38] sm:$0xf]
  %v91 = vld [vmem:[%s1 + $0x3c] sm:$0xf]
  %v92 = vld [vmem:[%s1 + $0x40] sm:$0xf]
  %v93 = vld [vmem:[%s1 + $0x44] sm:$0xf]
  %v94 = vld [vmem:[%s1 + $0x48] sm:$0xf]
  %v95 = vld [vmem:[%s1 + $0x4c] sm:$0xf]
  %v96 = vld [vmem:[%s1 + $0x50] sm:$0xf]
  %v97 = vld [vmem:[%s1 + $0x54] sm:$0xf]
  %v98 = vld [vmem:[%s1 + $0x58] sm:$0xf]
  %v99 = vld [vmem:[%s1 + $0x5c] sm:$0xf]
  %v100 = vld [vmem:[%s1 + $0x60] sm:$0xf]
  %v101 = vld [vmem:[%s1 + $0x64] sm:$0xf]
  %v102 = vld [vmem:[%s1 + $0x68] sm:$0xf]
  %v103 = vld [vmem:[%s1 + $0x6c] sm:$0xf]
  %v104 = vld [vmem:[%s1 + $0x70] sm:$0xf]
  %v105 = vld [vmem:[%s1 + $0x74] sm:$0xf]
  %v106 = vld [vmem:[%s1 + $0x78] sm:$0xf]
  %v107 = vld [vmem:[%s1 + $0x7c] sm:$0xf]
  %v140 = vunpack.c.l.b16 %v76
  %v141 = vunpack.c.l.b16 %v77
  %v142 = vunpack.c.l.b16 %v78
  %v143 = vunpack.c.l.b16 %v79
  %v144 = vunpack.c.l.b16 %v80
  %v145 = vunpack.c.l.b16 %v81
  %v146 = vunpack.c.l.b16 %v82
  %v147 = vunpack.c.l.b16 %v83
  %v148 = vunpack.c.l.b16 %v84
  %v149 = vunpack.c.l.b16 %v85
  %v150 = vunpack.c.l.b16 %v86
  %v151 = vunpack.c.l.b16 %v87
  %v152 = vunpack.c.l.b16 %v88
  %v153 = vunpack.c.l.b16 %v89
  %v154 = vunpack.c.l.b16 %v90
  %v155 = vunpack.c.l.b16 %v91
  %v156 = vunpack.c.l.b16 %v92
  %v157 = vunpack.c.l.b16 %v93
  %v158 = vunpack.c.l.b16 %v94
  %v159 = vunpack.c.l.b16 %v95
  %v160 = vunpack.c.l.b16 %v96
  %v161 = vunpack.c.l.b16 %v97
  %v162 = vunpack.c.l.b16 %v98
  %v163 = vunpack.c.l.b16 %v99
  %v164 = vunpack.c.l.b16 %v100
  %v165 = vunpack.c.l.b16 %v101
  %v166 = vunpack.c.l.b16 %v102
  %v167 = vunpack.c.l.b16 %v103
  %v168 = vunpack.c.l.b16 %v104
  %v169 = vunpack.c.l.b16 %v105
  %v170 = vunpack.c.l.b16 %v106
  %v171 = vunpack.c.l.b16 %v107
  %v172 = vpack.c.b16 %v141, %v140
  %v173 = vpack.c.b16 %v143, %v142
  %v174 = vpack.c.b16 %v145, %v144
  %v175 = vpack.c.b16 %v147, %v146
  %v176 = vpack.c.b16 %v149, %v148
  %v177 = vpack.c.b16 %v151, %v150
  %v178 = vpack.c.b16 %v153, %v152
  %v179 = vpack.c.b16 %v155, %v154
  %v180 = vpack.c.b16 %v157, %v156
  %v181 = vpack.c.b16 %v159, %v158
  %v182 = vpack.c.b16 %v161, %v160
  %v183 = vpack.c.b16 %v163, %v162
  %v184 = vpack.c.b16 %v165, %v164
  %v185 = vpack.c.b16 %v167, %v166
  %v186 = vpack.c.b16 %v169, %v168
  %v187 = vpack.c.b16 %v171, %v170
  %204 = vmatprep.subr.bf16.mxu0 0
  %205 = vmatpush1.bf16.msra.mxu0 %v172
  %206 = vmatprep.subr.bf16.mxu0 0
  %207 = vmatpush1.bf16.msra.mxu0 %v173
  %208 = vmatprep.subr.bf16.mxu0 0
  %209 = vmatpush1.bf16.msra.mxu0 %v174
  %210 = vmatprep.subr.bf16.mxu0 0
  %211 = vmatpush1.bf16.msra.mxu0 %v175
  %212 = vmatprep.subr.bf16.mxu0 0
  %213 = vmatpush1.bf16.msra.mxu0 %v176
  %214 = vmatprep.subr.bf16.mxu0 0
  %215 = vmatpush1.bf16.msra.mxu0 %v177
  %216 = vmatprep.subr.bf16.mxu0 0
  %217 = vmatpush1.bf16.msra.mxu0 %v178
  %218 = vmatprep.subr.bf16.mxu0 0
  %219 = vmatpush1.bf16.msra.mxu0 %v179
  %220 = vmatprep.subr.bf16.mxu0 0
  %221 = vmatpush1.bf16.msra.mxu0 %v180
  %222 = vmatprep.subr.bf16.mxu0 0
  %223 = vmatpush1.bf16.msra.mxu0 %v181
  %224 = vmatprep.subr.bf16.mxu0 0
  %225 = vmatpush1.bf16.msra.mxu0 %v182
  %226 = vmatprep.subr.bf16.mxu0 0
  %227 = vmatpush1.bf16.msra.mxu0 %v183
  %228 = vmatprep.subr.bf16.mxu0 0
  %229 = vmatpush1.bf16.msra.mxu0 %v184
  %230 = vmatprep.subr.bf16.mxu0 0
  %231 = vmatpush1.bf16.msra.mxu0 %v185
  %232 = vmatprep.subr.bf16.mxu0 0
  %233 = vmatpush1.bf16.msra.mxu0 %v186
  %234 = vmatprep.subr.bf16.mxu0 0
  %235 = vmatpush1.bf16.msra.mxu0 %v187
  %236 = vmatprep.mubr.bf16.mxu0 %v75
  %237 = vmatmul.mubr.bf16.gmra.mrb[0].mxu0 %v74
  %v238 = vpop.f32.mrb[0].mxu0
  %v239 = vadd.f32 0.0, %v238
  %v240 = vpop.f32.mrb[0].mxu0
  %v241 = vpop.f32.mrb[0].mxu0
  %v242 = vpop.f32.mrb[0].mxu0
  %243 = vdwg.mxu0
  %244 = vst [vmem:[%s4] sm:$0x3] %v239
  // Predicated region
  $region18: #{d_forward.5} parent=0 // pred_check
    _
  $region19: #{d_forward.5} parent=0 // pred_check_branch
    %246 = sbr.rel (0) target = $region21
  $region20: #{d_forward.5} parent=0 // pred_region
    _
  $region21: #{d_forward.5} parent=0 // pred_fallthru
    _
  // Predicated region
  $region22: #{d_forward.5} parent=0 // pred_check
    _
  $region23: #{d_forward.5} parent=0 // pred_check_branch
    %248 = sbr.rel (0) target = $region25
  $region24: #{d_forward.5} parent=0 // pred_region
    _
  $region25: #{d_forward.5} parent=0 // pred_fallthru
    _

</llo_original>
